<compile_context>
chip_gen: v6e
topology: v6e:2x2x1
jax: 0.10.0
libtpu: 0.0.40
codegen_flags: <defaults>
</compile_context>

<pallas_src>
import functools

import jax
import jax.numpy as jnp
from jax.experimental import pallas as pl
from jax.experimental.pallas import tpu as pltpu

_LANE = 128        # vreg lane width
_SUBLANE = 8       # f32 sublane count
_ROW_CAP = 4096    # max rows per batch tile
_BLOCK_BYTE_BUDGET = 4 << 20   # ~4 MiB of x+out block per grid step


def _round_up(n, m):
    return ((n + m - 1) // m) * m


def _cdiv(a, b):
    return (a + b - 1) // b


def _pad2(a, rows, cols):
    r, c = a.shape
    return jnp.pad(a, ((0, rows - r), (0, cols - c)))


def _tensorcores_per_chip():
    """Best-effort query of TensorCores per chip (2 on v7x, else 1)."""
    try:
        info = pltpu.get_tpu_info()
        for attr in ("tensorcores_per_chip", "num_tensorcores",
                     "num_cores", "cores_per_chip"):
            v = getattr(info, attr, None)
            if isinstance(v, int) and v >= 1:
                return min(v, 8)
    except Exception:
        pass
    return 1


def _mlp_kernel(x_ref, w1_ref, b1_ref, w2_ref, b2_ref, w3_ref, b3_ref, o_ref):
    # x arrives in its HBM dtype (f32) and is cast to bf16 on the VPU (which
    # has huge slack here); MXU runs bf16 x bf16 with f32 accumulation, and
    # bias/ReLU stay in f32 (v5e VPU has no bf16).
    x = x_ref[...].astype(jnp.bfloat16)
    h1 = jnp.dot(x, w1_ref[...], preferred_element_type=jnp.float32) + b1_ref[...]
    h1 = jnp.maximum(h1, 0.0).astype(jnp.bfloat16)
    h2 = jnp.dot(h1, w2_ref[...], preferred_element_type=jnp.float32) + b2_ref[...]
    h2 = jnp.maximum(h2, 0.0).astype(jnp.bfloat16)
    out = jnp.dot(h2, w3_ref[...], preferred_element_type=jnp.float32) + b3_ref[...]
    o_ref[...] = out.astype(o_ref.dtype)   # lane-dense (tile_b, 128) bf16 store


@functools.partial(jax.jit, static_argnames=("batch_tile",))
def qnetwork_forward(x, params, *, batch_tile=None):
    """x: (B, input_dim) float32. params: dict of w1,b1,w2,b2,w3,b3 (f32).

    Returns (B, output_dim) float32 (values carry bf16 rounding from the
    MXU operands and the bf16 output store)."""
    B, in_dim = x.shape
    h1 = params["w1"].shape[1]
    h2 = params["w2"].shape[1]
    out_dim = params["w3"].shape[1]

    # Lane-dense padded dims for weights / intermediates / output only.
    h1_p = _round_up(h1, _LANE)
    h2_p = _round_up(h2, _LANE)
    out_p = _round_up(out_dim, _LANE)

    # --- Batch tiling -------------------------------------------------------
    # Per-row bytes moved through the pipeline per step (f32 x in, bf16 out).
    bytes_per_row = in_dim * 4 + out_p * 2
    byte_cap = max(_SUBLANE, (_BLOCK_BYTE_BUDGET // bytes_per_row)
                   // _SUBLANE * _SUBLANE)
    cap = min(_ROW_CAP, byte_cap)

    if batch_tile is None:
        cores = _tensorcores_per_chip()
        # At least `cores` grid steps when B is big enough that the split is
        # worth the extra per-step overhead (so v7x uses both TensorCores);
        # otherwise balance tiles so the last block is not mostly padding.
        min_steps = cores if B >= cores * 256 else 1
        n_steps = max(min_steps, _cdiv(B, cap))
        batch_tile = _round_up(_cdiv(B, n_steps), _SUBLANE)
    batch_tile = max(_SUBLANE, _round_up(int(batch_tile), _SUBLANE))
    B_pad = _round_up(B, batch_tile)
    grid = (B_pad // batch_tile,)

    # --- Operands -----------------------------------------------------------
    # x: only batch-row padding (feature dim stays at its true size, f32).
    xp = x if B_pad == B else jnp.pad(x, ((0, B_pad - B), (0, 0)))

    # Weights/biases are tiny; pad + cast once (zero rows/cols are inert:
    # zero x-cols x zero W-rows contribute 0 and ReLU(0)=0).
    w1 = _pad2(params["w1"], in_dim, h1_p).astype(jnp.bfloat16)
    w2 = _pad2(params["w2"], h1_p, h2_p).astype(jnp.bfloat16)
    w3 = _pad2(params["w3"], h2_p, out_p).astype(jnp.bfloat16)
    b1 = _pad2(params["b1"], 1, h1_p).astype(jnp.float32)
    b2 = _pad2(params["b2"], 1, h2_p).astype(jnp.float32)
    b3 = _pad2(params["b3"], 1, out_p).astype(jnp.float32)

    # Weights/biases are grid-invariant (constant block index) and stay
    # resident in VMEM; only x / out are tiled along the batch axis.
    def full(shape):
        return pl.BlockSpec(shape, lambda i: (0, 0))

    out = pl.pallas_call(
        _mlp_kernel,
        out_shape=jax.ShapeDtypeStruct((B_pad, out_p), jnp.bfloat16),
        grid=grid,
        in_specs=[
            # x block: last dim == full array dim, so no 128 padding needed.
            pl.BlockSpec((batch_tile, in_dim), lambda i: (i, 0)),
            full((in_dim, h1_p)),  # w1
            full((1, h1_p)),       # b1
            full((h1_p, h2_p)),    # w2
            full((1, h2_p)),       # b2
            full((h2_p, out_p)),   # w3
            full((1, out_p)),      # b3
        ],
        out_specs=pl.BlockSpec((batch_tile, out_p), lambda i: (i, 0)),
        compiler_params=pltpu.CompilerParams(
            # TODO(synk): if plain "parallel" does not shard across v7x's two
            # TensorCores, switch to pltpu.CORE_PARALLEL gated on chip version.
            dimension_semantics=("parallel",),
        ),
    )(xp, w1, b1, w2, b2, w3, b3)

    # Strip batch/lane padding and upcast outside the kernel.
    return out[:B, :out_dim].astype(jnp.float32)


def init_qnetwork_params(key, input_dim, output_dim):
    """PyTorch nn.Linear-style init (U[-1/sqrt(fan_in), 1/sqrt(fan_in)]).
    Weights stored as (in, out) — transpose of PyTorch's (out, in)."""
    dims = [(input_dim, 128), (128, 64), (64, output_dim)]
    params = {}
    for idx, (fan_in, fan_out) in enumerate(dims, start=1):
        key, kw, kb = jax.random.split(key, 3)
        bound = 1.0 / jnp.sqrt(jnp.float32(fan_in))
        params[f"w{idx}"] = jax.random.uniform(
            kw, (fan_in, fan_out), jnp.float32, minval=-bound, maxval=bound)
        params[f"b{idx}"] = jax.random.uniform(
            kb, (1, fan_out), jnp.float32, minval=-bound, maxval=bound)
    return params


def qnetwork_reference(x, params):
    """Pure-f32 reference (matches the PyTorch module's math)."""
    h1 = jnp.maximum(x @ params["w1"] + params["b1"], 0.0)
    h2 = jnp.maximum(h1 @ params["w2"] + params["b2"], 0.0)
    return h2 @ params["w3"] + params["b3"]


def qnetwork_reference_bf16(x, params):
    """Precision-matched reference: bf16 MXU operands, f32 accumulation."""
    bf = jnp.bfloat16
    h1 = jnp.dot(x.astype(bf), params["w1"].astype(bf),
                 preferred_element_type=jnp.float32) + params["b1"]
    h1 = jnp.maximum(h1, 0.0).astype(bf)
    h2 = jnp.dot(h1, params["w2"].astype(bf),
                 preferred_element_type=jnp.float32) + params["b2"]
    h2 = jnp.maximum(h2, 0.0).astype(bf)
    return jnp.dot(h2, params["w3"].astype(bf),
                   preferred_element_type=jnp.float32) + params["b3"]


if __name__ == "__main__":
    key = jax.random.PRNGKey(0)
    input_dim, output_dim, batch = 16, 4, 8

    kx, kp = jax.random.split(key)
    x = jax.random.normal(kx, (batch, input_dim), jnp.float32)
    params = init_qnetwork_params(kp, input_dim, output_dim)

    out = qnetwork_forward(x, params)
    out = jax.block_until_ready(out)

    assert out.shape == (batch, output_dim)
    assert out.dtype == jnp.float32

    ref_bf16 = qnetwork_reference_bf16(x, params)
    ref_f32 = qnetwork_reference(x, params)
    # Output store is bf16, so allow bf16-level rounding vs the matched ref.
    assert jnp.allclose(out, ref_bf16, atol=2e-2, rtol=2e-2), \
        "mismatch vs precision-matched (bf16 MXU, f32 acc) reference"
    assert jnp.allclose(out, ref_f32, atol=5e-2, rtol=5e-2), \
        "mismatch vs f32 reference beyond bf16 tolerance"

    print("KERNEL_OK")
</pallas_src>

<mosaic_0001>
module attributes {stable_mosaic.version = 11 : i64} {
  func.func @_mlp_kernel(%arg0: i32, %arg1: memref<8x16xf32, #tpu.memory_space<vmem>>, %arg2: memref<16x128xbf16, #tpu.memory_space<vmem>>, %arg3: memref<1x128xf32, #tpu.memory_space<vmem>>, %arg4: memref<128x128xbf16, #tpu.memory_space<vmem>>, %arg5: memref<1x128xf32, #tpu.memory_space<vmem>>, %arg6: memref<128x128xbf16, #tpu.memory_space<vmem>>, %arg7: memref<1x128xf32, #tpu.memory_space<vmem>>, %arg8: memref<8x128xbf16, #tpu.memory_space<vmem>>) attributes {dimension_semantics = [#tpu.dimension_semantics<parallel>], iteration_bounds = array<i64: 1>, scalar_prefetch = 0 : i64, scratch_operands = 0 : i64, tpu.core_type = #tpu.core_type<tc>, window_params = [{transform_indices = @transform_0, window_bounds = array<i64: 8, 16>}, {pipeline_mode = #tpu.pipeline_mode<synchronous>, transform_indices = @transform_1, window_bounds = array<i64: 16, 128>}, {pipeline_mode = #tpu.pipeline_mode<synchronous>, transform_indices = @transform_2, window_bounds = array<i64: 1, 128>}, {pipeline_mode = #tpu.pipeline_mode<synchronous>, transform_indices = @transform_3, window_bounds = array<i64: 128, 128>}, {pipeline_mode = #tpu.pipeline_mode<synchronous>, transform_indices = @transform_4, window_bounds = array<i64: 1, 128>}, {pipeline_mode = #tpu.pipeline_mode<synchronous>, transform_indices = @transform_5, window_bounds = array<i64: 128, 128>}, {pipeline_mode = #tpu.pipeline_mode<synchronous>, transform_indices = @transform_6, window_bounds = array<i64: 1, 128>}, {transform_indices = @transform_7, window_bounds = array<i64: 8, 128>}]} {
    %c0 = arith.constant 0 : index
    %c0_0 = arith.constant 0 : index
    %0 = vector.load %arg1[%c0, %c0_0] : memref<8x16xf32, #tpu.memory_space<vmem>>, vector<8x16xf32>
    %1 = arith.truncf %0 : vector<8x16xf32> to vector<8x16xbf16>
    %c0_1 = arith.constant 0 : index
    %c0_2 = arith.constant 0 : index
    %2 = vector.load %arg2[%c0_1, %c0_2] : memref<16x128xbf16, #tpu.memory_space<vmem>>, vector<16x128xbf16>
    %cst = arith.constant dense<0.000000e+00> : vector<8x128xf32>
    %3 = tpu.matmul %1, %2, %cst {dimension_numbers = #tpu.dot_dimension_numbers<[1], [0], [0], [1], [0, 0, 1, 1], [], []>} : vector<8x16xbf16>, vector<16x128xbf16>, vector<8x128xf32> -> vector<8x128xf32>
    %c0_3 = arith.constant 0 : index
    %c0_4 = arith.constant 0 : index
    %4 = vector.load %arg3[%c0_3, %c0_4] : memref<1x128xf32, #tpu.memory_space<vmem>>, vector<1x128xf32>
    %5 = vector.broadcast %4 : vector<1x128xf32> to vector<8x128xf32>
    %6 = arith.addf %3, %5 : vector<8x128xf32>
    %cst_5 = arith.constant 0.000000e+00 : f32
    %7 = vector.broadcast %cst_5 : f32 to vector<8x128xf32>
    %8 = arith.maximumf %6, %7 : vector<8x128xf32>
    %9 = arith.truncf %8 : vector<8x128xf32> to vector<8x128xbf16>
    %c0_6 = arith.constant 0 : index
    %c0_7 = arith.constant 0 : index
    %10 = vector.load %arg4[%c0_6, %c0_7] : memref<128x128xbf16, #tpu.memory_space<vmem>>, vector<128x128xbf16>
    %cst_8 = arith.constant dense<0.000000e+00> : vector<8x128xf32>
    %11 = tpu.matmul %9, %10, %cst_8 {dimension_numbers = #tpu.dot_dimension_numbers<[1], [0], [0], [1], [0, 0, 1, 1], [], []>} : vector<8x128xbf16>, vector<128x128xbf16>, vector<8x128xf32> -> vector<8x128xf32>
    %c0_9 = arith.constant 0 : index
    %c0_10 = arith.constant 0 : index
    %12 = vector.load %arg5[%c0_9, %c0_10] : memref<1x128xf32, #tpu.memory_space<vmem>>, vector<1x128xf32>
    %13 = vector.broadcast %12 : vector<1x128xf32> to vector<8x128xf32>
    %14 = arith.addf %11, %13 : vector<8x128xf32>
    %cst_11 = arith.constant 0.000000e+00 : f32
    %15 = vector.broadcast %cst_11 : f32 to vector<8x128xf32>
    %16 = arith.maximumf %14, %15 : vector<8x128xf32>
    %17 = arith.truncf %16 : vector<8x128xf32> to vector<8x128xbf16>
    %c0_12 = arith.constant 0 : index
    %c0_13 = arith.constant 0 : index
    %18 = vector.load %arg6[%c0_12, %c0_13] : memref<128x128xbf16, #tpu.memory_space<vmem>>, vector<128x128xbf16>
    %cst_14 = arith.constant dense<0.000000e+00> : vector<8x128xf32>
    %19 = tpu.matmul %17, %18, %cst_14 {dimension_numbers = #tpu.dot_dimension_numbers<[1], [0], [0], [1], [0, 0, 1, 1], [], []>} : vector<8x128xbf16>, vector<128x128xbf16>, vector<8x128xf32> -> vector<8x128xf32>
    %c0_15 = arith.constant 0 : index
    %c0_16 = arith.constant 0 : index
    %20 = vector.load %arg7[%c0_15, %c0_16] : memref<1x128xf32, #tpu.memory_space<vmem>>, vector<1x128xf32>
    %21 = vector.broadcast %20 : vector<1x128xf32> to vector<8x128xf32>
    %22 = arith.addf %19, %21 : vector<8x128xf32>
    %23 = arith.truncf %22 : vector<8x128xf32> to vector<8x128xbf16>
    %c0_17 = arith.constant 0 : index
    %c0_18 = arith.constant 0 : index
    %24 = vector.load %arg8[%c0_17, %c0_18] : memref<8x128xbf16, #tpu.memory_space<vmem>>, vector<8x128xbf16>
    tpu.vector_store %arg8[%c0_17, %c0_18], %23 {strides = array<i32>} : memref<8x128xbf16, #tpu.memory_space<vmem>>, vector<8x128xbf16>,
    return
  }
  func.func @transform_0(%arg0: i32) -> (i32, i32) {
    %c0_i32 = arith.constant 0 : i32
    %c0_i32_0 = arith.constant 0 : i32
    return %arg0, %c0_i32 : i32, i32
  }
  func.func @transform_1(%arg0: i32) -> (i32, i32) {
    %c0_i32 = arith.constant 0 : i32
    %c0_i32_0 = arith.constant 0 : i32
    %c0_i32_1 = arith.constant 0 : i32
    return %c0_i32, %c0_i32_0 : i32, i32
  }
  func.func @transform_2(%arg0: i32) -> (i32, i32) {
    %c0_i32 = arith.constant 0 : i32
    %c0_i32_0 = arith.constant 0 : i32
    %c0_i32_1 = arith.constant 0 : i32
    return %c0_i32, %c0_i32_0 : i32, i32
  }
  func.func @transform_3(%arg0: i32) -> (i32, i32) {
    %c0_i32 = arith.constant 0 : i32
    %c0_i32_0 = arith.constant 0 : i32
    %c0_i32_1 = arith.constant 0 : i32
    return %c0_i32, %c0_i32_0 : i32, i32
  }
  func.func @transform_4(%arg0: i32) -> (i32, i32) {
    %c0_i32 = arith.constant 0 : i32
    %c0_i32_0 = arith.constant 0 : i32
    %c0_i32_1 = arith.constant 0 : i32
    return %c0_i32, %c0_i32_0 : i32, i32
  }
  func.func @transform_5(%arg0: i32) -> (i32, i32) {
    %c0_i32 = arith.constant 0 : i32
    %c0_i32_0 = arith.constant 0 : i32
    %c0_i32_1 = arith.constant 0 : i32
    return %c0_i32, %c0_i32_0 : i32, i32
  }
  func.func @transform_6(%arg0: i32) -> (i32, i32) {
    %c0_i32 = arith.constant 0 : i32
    %c0_i32_0 = arith.constant 0 : i32
    %c0_i32_1 = arith.constant 0 : i32
    return %c0_i32, %c0_i32_0 : i32, i32
  }
  func.func @transform_7(%arg0: i32) -> (i32, i32) {
    %c0_i32 = arith.constant 0 : i32
    %c0_i32_0 = arith.constant 0 : i32
    return %arg0, %c0_i32 : i32, i32
  }
}

</mosaic_0001>

<llo_original>
// kernel: qnetwork_forward.1
$region0: #{qnetwork_forward.1}
  #allocation0 [shape = 'u32[]', space=smem, size = 0x4, offset = 0x4, fixed_abs, tag = 'smem constant byte address 0x4 - core index']
  #allocation1 [shape = 'u32[144,128]{1,0:T(1,128)}', space=vmem, size = 0x12000, scoped, tag = 'internal scratch']
  %s0 = inlined_call_operand.vmem [shape: f32[8,16], index: 0, kind: input, shape index: {}]
  %s1 = inlined_call_operand.vmem [shape: bf16[16,128], index: 1, kind: input, shape index: {}]
  %s2 = inlined_call_operand.vmem [shape: f32[1,128], index: 2, kind: input, shape index: {}]
  %s3 = inlined_call_operand.vmem [shape: bf16[128,128], index: 3, kind: input, shape index: {}]
  %s4 = inlined_call_operand.vmem [shape: f32[1,128], index: 4, kind: input, shape index: {}]
  %s5 = inlined_call_operand.vmem [shape: bf16[128,128], index: 5, kind: input, shape index: {}]
  %s6 = inlined_call_operand.vmem [shape: f32[1,128], index: 6, kind: input, shape index: {}]
  %s7 = inlined_call_operand.vmem [shape: bf16[8,128], index: 7, kind: output, shape index: {}]
  %s8 = sld [smem:[#allocation0]]
  $region38: #{qnetwork_forward.1} parent=0
    _
  %s10 = ssub.s32 1, %s8
  %s11 = scalar_select 0, %s10, %s8
  // Predicated region
  $region2: #{qnetwork_forward.1} parent=0 // pred_check
    _
  $region3: #{qnetwork_forward.1} parent=0 // pred_check_branch
    %13 = sbr.rel (0) target = $region5
  $region4: #{qnetwork_forward.1} parent=0 // pred_region
    _
  $region5: #{qnetwork_forward.1} parent=0 // pred_fallthru
    _
  // Predicated region
  $region6: #{qnetwork_forward.1} parent=0 // pred_check
    _
  $region7: #{qnetwork_forward.1} parent=0 // pred_check_branch
    %15 = sbr.rel (0) target = $region9
  $region8: #{qnetwork_forward.1} parent=0 // pred_region
    _
  $region9: #{qnetwork_forward.1} parent=0 // pred_fallthru
    _
  // Predicated region
  $region10: #{qnetwork_forward.1} parent=0 // pred_check
    _
  $region11: #{qnetwork_forward.1} parent=0 // pred_check_branch
    %17 = sbr.rel (0) target = $region13
  $region12: #{qnetwork_forward.1} parent=0 // pred_region
    _
  $region13: #{qnetwork_forward.1} parent=0 // pred_fallthru
    _
  // Predicated region
  $region14: #{qnetwork_forward.1} parent=0 // pred_check
    _
  $region15: #{qnetwork_forward.1} parent=0 // pred_check_branch
    %19 = sbr.rel (0) target = $region17
  $region16: #{qnetwork_forward.1} parent=0 // pred_region
    _
  $region17: #{qnetwork_forward.1} parent=0 // pred_fallthru
    _
  // Predicated region
  $region18: #{qnetwork_forward.1} parent=0 // pred_check
    _
  $region19: #{qnetwork_forward.1} parent=0 // pred_check_branch
    %21 = sbr.rel (0) target = $region21
  $region20: #{qnetwork_forward.1} parent=0 // pred_region
    _
  $region21: #{qnetwork_forward.1} parent=0 // pred_fallthru
    _
  // Predicated region
  $region22: #{qnetwork_forward.1} parent=0 // pred_check
    _
  $region23: #{qnetwork_forward.1} parent=0 // pred_check_branch
    %23 = sbr.rel (0) target = $region25
  $region24: #{qnetwork_forward.1} parent=0 // pred_region
    _
  $region25: #{qnetwork_forward.1} parent=0 // pred_fallthru
    _
  // Predicated region
  $region26: #{qnetwork_forward.1} parent=0 // pred_check
    _
  $region27: #{qnetwork_forward.1} parent=0 // pred_check_branch
    %25 = sbr.rel (0) target = $region29
  $region28: #{qnetwork_forward.1} parent=0 // pred_region
    _
  $region29: #{qnetwork_forward.1} parent=0 // pred_fallthru
    _
  %v27 = vld [vmem:[%s0] sm:$0xff]
  %v28 = vpack.c.bf16 %v27, %v27
  %v29 = vld [vmem:[%s1] sm:$0xf]
  %v30 = vld [vmem:[%s1 + $0x4] sm:$0xf]
  %v31 = vld [vmem:[%s2] sm:$0x1]
  %v33 = vlaneseq
  %v34 = vshrl.u32 %v33, 7
  %v35 = vsub.s32 0, %v34
  %v36 = vrot.slane %v31, %v35
  %v40 = vunpack.c.l.b16 %v29
  %v41 = vunpack.c.l.b16 %v30
  %v42 = vpack.c.b16 %v41, %v40
  %vm44 = vcmask 130048
  %v46 = vsel %vm44, %v28, 0
  %48 = vmatprep.subr.bf16.mxu0 0
  %49 = vmatpush1.bf16.msra.mxu0 0
  %50 = vmatprep.subr.bf16.mxu0 0
  %51 = vmatpush1.bf16.msra.mxu0 0
  %52 = vmatprep.subr.bf16.mxu0 0
  %53 = vmatpush1.bf16.msra.mxu0 0
  %54 = vmatprep.subr.bf16.mxu0 0
  %55 = vmatpush1.bf16.msra.mxu0 0
  %56 = vmatprep.subr.bf16.mxu0 0
  %57 = vmatpush1.bf16.msra.mxu0 0
  %58 = vmatprep.subr.bf16.mxu0 0
  %59 = vmatpush1.bf16.msra.mxu0 0
  %60 = vmatprep.subr.bf16.mxu0 0
  %61 = vmatpush1.bf16.msra.mxu0 0
  %62 = vmatprep.subr.bf16.mxu0 0
  %63 = vmatpush1.bf16.msra.mxu0 %v42
  %64 = vmatprep.subr.bf16.mxu0 0
  %65 = vmatpush2.bf16.msra.mxu0 0
  %66 = vmatprep.subr.bf16.mxu0 0
  %67 = vmatpush2.bf16.msra.mxu0 0
  %68 = vmatprep.subr.bf16.mxu0 0
  %69 = vmatpush2.bf16.msra.mxu0 0
  %70 = vmatprep.subr.bf16.mxu0 0
  %71 = vmatpush2.bf16.msra.mxu0 0
  %72 = vmatprep.subr.bf16.mxu0 0
  %73 = vmatpush2.bf16.msra.mxu0 0
  %74 = vmatprep.subr.bf16.mxu0 0
  %75 = vmatpush2.bf16.msra.mxu0 0
  %76 = vmatprep.subr.bf16.mxu0 0
  %77 = vmatpush2.bf16.msra.mxu0 0
  %78 = vmatprep.subr.bf16.mxu0 0
  %79 = vmatpush2.bf16.msra.mxu0 0
  %80 = vmatprep.mubr.bf16.mxu0 0
  %81 = vmatmul.mubr.bf16.gmra.mxu0 %v46
  %v82 = vpop.f32.mrf.mxu0
  %v83 = vadd.f32 %v36, %v82
  %v84 = vpop.f32.mrf.mxu0
  %v85 = vpop.f32.mrf.mxu0
  %v86 = vpop.f32.mrf.mxu0
  %87 = vdwg.mxu0
  %v88 = vmax.f32 %v83, 0.0
  %v89 = vpack.c.bf16 %v88, %v88
  %v90 = vld [vmem:[%s3] sm:$0xf]
  %v91 = vld [vmem:[%s3 + $0x4] sm:$0xf]
  %v92 = vld [vmem:[%s3 + $0x8] sm:$0xf]
  %v93 = vld [vmem:[%s3 + $0xc] sm:$0xf]
  %v94 = vld [vmem:[%s3 + $0x10] sm:$0xf]
  %v95 = vld [vmem:[%s3 + $0x14] sm:$0xf]
  %v96 = vld [vmem:[%s3 + $0x18] sm:$0xf]
  %v97 = vld [vmem:[%s3 + $0x1c] sm:$0xf]
  %v98 = vld [vmem:[%s3 + $0x20] sm:$0xf]
  %v99 = vld [vmem:[%s3 + $0x24] sm:$0xf]
  %v100 = vld [vmem:[%s3 + $0x28] sm:$0xf]
  %v101 = vld [vmem:[%s3 + $0x2c] sm:$0xf]
  %v102 = vld [vmem:[%s3 + $0x30] sm:$0xf]
  %v103 = vld [vmem:[%s3 + $0x34] sm:$0xf]
  %v104 = vld [vmem:[%s3 + $0x38] sm:$0xf]
  %v105 = vld [vmem:[%s3 + $0x3c] sm:$0xf]
  %v106 = vld [vmem:[%s4] sm:$0x1]
  %v108 = vlaneseq
  %v109 = vshrl.u32 %v108, 7
  %v110 = vsub.s32 0, %v109
  %v111 = vrot.slane %v106, %v110
  %v129 = vunpack.c.l.b16 %v90
  %v130 = vunpack.c.l.b16 %v91
  %v131 = vunpack.c.l.b16 %v92
  %v132 = vunpack.c.l.b16 %v93
  %v133 = vunpack.c.l.b16 %v94
  %v134 = vunpack.c.l.b16 %v95
  %v135 = vunpack.c.l.b16 %v96
  %v136 = vunpack.c.l.b16 %v97
  %v137 = vunpack.c.l.b16 %v98
  %v138 = vunpack.c.l.b16 %v99
  %v139 = vunpack.c.l.b16 %v100
  %v140 = vunpack.c.l.b16 %v101
  %v141 = vunpack.c.l.b16 %v102
  %v142 = vunpack.c.l.b16 %v103
  %v143 = vunpack.c.l.b16 %v104
  %v144 = vunpack.c.l.b16 %v105
  %v145 = vpack.c.b16 %v130, %v129
  %v146 = vpack.c.b16 %v132, %v131
  %v147 = vpack.c.b16 %v134, %v133
  %v148 = vpack.c.b16 %v136, %v135
  %v149 = vpack.c.b16 %v138, %v137
  %v150 = vpack.c.b16 %v140, %v139
  %v151 = vpack.c.b16 %v142, %v141
  %v152 = vpack.c.b16 %v144, %v143
  %161 = vmatprep.subr.bf16.mxu0 0
  %162 = vmatpush1.bf16.msra.mxu0 %v152
  %163 = vmatprep.subr.bf16.mxu0 0
  %164 = vmatpush1.bf16.msra.mxu0 %v151
  %165 = vmatprep.subr.bf16.mxu0 0
  %166 = vmatpush1.bf16.msra.mxu0 %v150
  %167 = vmatprep.subr.bf16.mxu0 0
  %168 = vmatpush1.bf16.msra.mxu0 %v149
  %169 = vmatprep.subr.bf16.mxu0 0
  %170 = vmatpush1.bf16.msra.mxu0 %v148
  %171 = vmatprep.subr.bf16.mxu0 0
  %172 = vmatpush1.bf16.msra.mxu0 %v147
  %173 = vmatprep.subr.bf16.mxu0 0
  %174 = vmatpush1.bf16.msra.mxu0 %v146
  %175 = vmatprep.subr.bf16.mxu0 0
  %176 = vmatpush1.bf16.msra.mxu0 %v145
  %177 = vmatprep.subr.bf16.mxu0 0
  %178 = vmatpush2.bf16.msra.mxu0 0
  %179 = vmatprep.subr.bf16.mxu0 0
  %180 = vmatpush2.bf16.msra.mxu0 0
  %181 = vmatprep.subr.bf16.mxu0 0
  %182 = vmatpush2.bf16.msra.mxu0 0
  %183 = vmatprep.subr.bf16.mxu0 0
  %184 = vmatpush2.bf16.msra.mxu0 0
  %185 = vmatprep.subr.bf16.mxu0 0
  %186 = vmatpush2.bf16.msra.mxu0 0
  %187 = vmatprep.subr.bf16.mxu0 0
  %188 = vmatpush2.bf16.msra.mxu0 0
  %189 = vmatprep.subr.bf16.mxu0 0
  %190 = vmatpush2.bf16.msra.mxu0 0
  %191 = vmatprep.subr.bf16.mxu0 0
  %192 = vmatpush2.bf16.msra.mxu0 0
  %193 = vmatprep.mubr.bf16.mxu0 0
  %194 = vmatmul.mubr.bf16.gmra.mxu0 %v89
  %v195 = vpop.f32.mrf.mxu0
  %v196 = vadd.f32 %v111, %v195
  %v197 = vpop.f32.mrf.mxu0
  %v198 = vpop.f32.mrf.mxu0
  %v199 = vpop.f32.mrf.mxu0
  %200 = vdwg.mxu0
  %v201 = vmax.f32 %v196, 0.0
  %v202 = vpack.c.bf16 %v201, %v201
  %v203 = vld [vmem:[%s5] sm:$0xf]
  %v204 = vld [vmem:[%s5 + $0x4] sm:$0xf]
  %v205 = vld [vmem:[%s5 + $0x8] sm:$0xf]
  %v206 = vld [vmem:[%s5 + $0xc] sm:$0xf]
  %v207 = vld [vmem:[%s5 + $0x10] sm:$0xf]
  %v208 = vld [vmem:[%s5 + $0x14] sm:$0xf]
  %v209 = vld [vmem:[%s5 + $0x18] sm:$0xf]
  %v210 = vld [vmem:[%s5 + $0x1c] sm:$0xf]
  %v211 = vld [vmem:[%s5 + $0x20] sm:$0xf]
  %v212 = vld [vmem:[%s5 + $0x24] sm:$0xf]
  %v213 = vld [vmem:[%s5 + $0x28] sm:$0xf]
  %v214 = vld [vmem:[%s5 + $0x2c] sm:$0xf]
  %v215 = vld [vmem:[%s5 + $0x30] sm:$0xf]
  %v216 = vld [vmem:[%s5 + $0x34] sm:$0xf]
  %v217 = vld [vmem:[%s5 + $0x38] sm:$0xf]
  %v218 = vld [vmem:[%s5 + $0x3c] sm:$0xf]
  %v219 = vld [vmem:[%s6] sm:$0x1]
  %v221 = vlaneseq
  %v222 = vshrl.u32 %v221, 7
  %v223 = vsub.s32 0, %v222
  %v224 = vrot.slane %v219, %v223
  %v242 = vunpack.c.l.b16 %v203
  %v243 = vunpack.c.l.b16 %v204
  %v244 = vunpack.c.l.b16 %v205
  %v245 = vunpack.c.l.b16 %v206
  %v246 = vunpack.c.l.b16 %v207
  %v247 = vunpack.c.l.b16 %v208
  %v248 = vunpack.c.l.b16 %v209
  %v249 = vunpack.c.l.b16 %v210
  %v250 = vunpack.c.l.b16 %v211
  %v251 = vunpack.c.l.b16 %v212
  %v252 = vunpack.c.l.b16 %v213
  %v253 = vunpack.c.l.b16 %v214
  %v254 = vunpack.c.l.b16 %v215
  %v255 = vunpack.c.l.b16 %v216
  %v256 = vunpack.c.l.b16 %v217
  %v257 = vunpack.c.l.b16 %v218
  %v258 = vpack.c.b16 %v243, %v242
  %v259 = vpack.c.b16 %v245, %v244
  %v260 = vpack.c.b16 %v247, %v246
  %v261 = vpack.c.b16 %v249, %v248
  %v262 = vpack.c.b16 %v251, %v250
  %v263 = vpack.c.b16 %v253, %v252
  %v264 = vpack.c.b16 %v255, %v254
  %v265 = vpack.c.b16 %v257, %v256
  %274 = vmatprep.subr.bf16.mxu0 0
  %275 = vmatpush1.bf16.msra.mxu0 %v265
  %276 = vmatprep.subr.bf16.mxu0 0
  %277 = vmatpush1.bf16.msra.mxu0 %v264
  %278 = vmatprep.subr.bf16.mxu0 0
  %279 = vmatpush1.bf16.msra.mxu0 %v263
  %280 = vmatprep.subr.bf16.mxu0 0
  %281 = vmatpush1.bf16.msra.mxu0 %v262
  %282 = vmatprep.subr.bf16.mxu0 0
  %283 = vmatpush1.bf16.msra.mxu0 %v261
  %284 = vmatprep.subr.bf16.mxu0 0
  %285 = vmatpush1.bf16.msra.mxu0 %v260
  %286 = vmatprep.subr.bf16.mxu0 0
  %287 = vmatpush1.bf16.msra.mxu0 %v259
  %288 = vmatprep.subr.bf16.mxu0 0
  %289 = vmatpush1.bf16.msra.mxu0 %v258
  %290 = vmatprep.subr.bf16.mxu0 0
  %291 = vmatpush2.bf16.msra.mxu0 0
  %292 = vmatprep.subr.bf16.mxu0 0
  %293 = vmatpush2.bf16.msra.mxu0 0
  %294 = vmatprep.subr.bf16.mxu0 0
  %295 = vmatpush2.bf16.msra.mxu0 0
  %296 = vmatprep.subr.bf16.mxu0 0
  %297 = vmatpush2.bf16.msra.mxu0 0
  %298 = vmatprep.subr.bf16.mxu0 0
  %299 = vmatpush2.bf16.msra.mxu0 0
  %300 = vmatprep.subr.bf16.mxu0 0
  %301 = vmatpush2.bf16.msra.mxu0 0
  %302 = vmatprep.subr.bf16.mxu0 0
  %303 = vmatpush2.bf16.msra.mxu0 0
  %304 = vmatprep.subr.bf16.mxu0 0
  %305 = vmatpush2.bf16.msra.mxu0 0
  %306 = vmatprep.mubr.bf16.mxu0 0
  %307 = vmatmul.mubr.bf16.gmra.mxu0 %v202
  %v308 = vpop.f32.mrf.mxu0
  %v309 = vadd.f32 %v224, %v308
  %v310 = vpop.f32.mrf.mxu0
  %v311 = vpop.f32.mrf.mxu0
  %v312 = vpop.f32.mrf.mxu0
  %313 = vdwg.mxu0
  %v314 = vpack.c.bf16 %v309, %v309
  %315 = vst [vmem:[%s7] sm:$0xf] %v314
  // Predicated region
  $region30: #{qnetwork_forward.1} parent=0 // pred_check
    _
  $region31: #{qnetwork_forward.1} parent=0 // pred_check_branch
    %317 = sbr.rel (0) target = $region33
  $region32: #{qnetwork_forward.1} parent=0 // pred_region
    _
  $region33: #{qnetwork_forward.1} parent=0 // pred_fallthru
    _
  // Predicated region
  $region34: #{qnetwork_forward.1} parent=0 // pred_check
    _
  $region35: #{qnetwork_forward.1} parent=0 // pred_check_branch
    %319 = sbr.rel (0) target = $region37
  $region36: #{qnetwork_forward.1} parent=0 // pred_region
    _
  $region37: #{qnetwork_forward.1} parent=0 // pred_fallthru
    _

</llo_original>
